<compile_context>
chip_gen: v5e
topology: v5e:2x2
jax: 0.10.0
libtpu: 0.0.40
codegen_flags: <defaults>
</compile_context>

<pallas_src>
import functools

import jax
import jax.numpy as jnp
from jax import lax
from jax.experimental import pallas as pl
from jax.experimental.pallas import tpu as pltpu


def _hf_enhancer_kernel(x_ref, masks_ref, w1_ref, wd_ref, wp_ref, bp_ref, o_ref,
                        *, C, H, W, roll_fwd):
    """x_ref/o_ref: (C, H*W) VMEM.  masks_ref: (4, 1, H*W) f32 border masks.
    w1_ref: (9, C, C), wd_ref: (9, C, 1), wp_ref: (C, C), bp_ref: (C, 1)  (all VMEM)."""
    f32 = jnp.float32
    L = H * W
    HIGH = jax.lax.Precision.HIGHEST

    # Border-validity masks (precomputed in the wrapper as 0/1 f32).
    col_ok = {-1: masks_ref[0], 1: masks_ref[1]}   # (w-1) >= 0  /  (w+1) <= W-1
    row_ok = {-1: masks_ref[2], 1: masks_ref[3]}   # (h-1) >= 0  /  (h+1) <= H-1

    def shift(v, dh, dw):
        """out[:, h*W + w] = v[:, (h+dh)*W + (w+dw)] when in-bounds, else 0."""
        s = dh * W + dw
        if s == 0:
            shifted = v
        else:
            amt = (-s) % L if roll_fwd else s % L
            shifted = pltpu.roll(v, shift=amt, axis=1)
        m = None
        if dh != 0:
            m = row_ok[dh]
        if dw != 0:
            m = col_ok[dw] if m is None else m * col_ok[dw]
        return shifted if m is None else shifted * m

    x = x_ref[...].astype(f32)                                    # (C, L)

    # ---- hf = x - avg_pool2d(x, 3, 1, pad=1)  (always /9); separable 3-sum. ----
    rowsum = shift(x, 0, -1) + x + shift(x, 0, 1)
    pooled = shift(rowsum, -1, 0) + rowsum + shift(rowsum, 1, 0)
    hf = x - pooled * (1.0 / 9.0)

    # ---- Conv2d(C, C, 3, padding=1, bias=False) + ReLU: per-tap MXU matmuls. ----
    acc = jnp.zeros((C, L), f32)
    for kh in range(3):
        for kw in range(3):
            t = kh * 3 + kw
            acc = acc + jnp.dot(w1_ref[t], shift(hf, kh - 1, kw - 1),
                                preferred_element_type=f32, precision=HIGH)
    relu1 = jnp.maximum(acc, 0.0)

    # ---- Depthwise Conv2d(C, C, 3, padding=1, groups=C, bias=False): VPU. ----
    dw_acc = jnp.zeros((C, L), f32)
    for kh in range(3):
        for kw in range(3):
            t = kh * 3 + kw
            dw_acc = dw_acc + shift(relu1, kh - 1, kw - 1) * wd_ref[t]

    # ---- Pointwise Conv2d(C, C, 1); alpha already folded into wp_ref / bp_ref: MXU. ----
    out = jnp.dot(wp_ref[...], dw_acc, preferred_element_type=f32,
                  precision=HIGH) + bp_ref[...]
    o_ref[...] = out.astype(o_ref.dtype)


@functools.lru_cache(maxsize=None)
def _roll_matches_jnp_roll():
    """True iff pltpu.roll(v, s, axis)[i] == v[(i - s) % n] (i.e. jnp.roll semantics)."""
    def probe(x_ref, o_ref):
        o_ref[...] = pltpu.roll(x_ref[...], shift=1, axis=1)
    x = jnp.tile(lax.iota(jnp.float32, 128)[None, :], (8, 1))
    y = pl.pallas_call(probe, out_shape=jax.ShapeDtypeStruct((8, 128), jnp.float32))(x)
    return bool(y[0, 1] == 0.0)


def high_freq_enhancer(x, w1, wd, wp, bp, alpha):
    """x: (N, C, H, W) f32.  w1: (C, C, 3, 3), wd: (C, 3, 3), wp: (C, C), bp: (C,),
    alpha: scalar.  Returns (N, C, H, W)."""
    N, C, H, W = x.shape
    L = H * W
    roll_fwd = _roll_matches_jnp_roll()

    # Lane-dense layout: flatten spatial dims (free reshape on contiguous NCHW data).
    x_flat = x.reshape(N, C, L)

    # Border-validity masks for the four elementary shifts, as 0/1 f32.
    w_idx = jnp.arange(L, dtype=jnp.int32) % W
    h_idx = jnp.arange(L, dtype=jnp.int32) // W
    masks = jnp.stack([w_idx >= 1, w_idx <= W - 2,
                       h_idx >= 1, h_idx <= H - 2]).astype(jnp.float32).reshape(4, 1, L)

    # Weight repack: per-tap (C_out, C_in) matrices; fold alpha into the pointwise stage.
    w1_t = jnp.transpose(w1, (2, 3, 0, 1)).reshape(9, C, C).astype(jnp.float32)
    wd_t = jnp.transpose(wd.reshape(C, 9), (1, 0)).reshape(9, C, 1).astype(jnp.float32)
    alpha_f = jnp.asarray(alpha, jnp.float32)
    wp_s = (alpha_f * wp).astype(jnp.float32)                 # (C, C)
    bp_s = (alpha_f * bp).astype(jnp.float32).reshape(C, 1)   # (C, 1)

    kernel = functools.partial(_hf_enhancer_kernel, C=C, H=H, W=W, roll_fwd=roll_fwd)
    out_flat = pl.pallas_call(
        kernel,
        out_shape=jax.ShapeDtypeStruct((N, C, L), x.dtype),
        grid=(N,),
        in_specs=[
            pl.BlockSpec((None, C, L), lambda n: (n, 0, 0)),   # x, one batch element
            pl.BlockSpec((4, 1, L), lambda n: (0, 0, 0)),      # border masks
            pl.BlockSpec((9, C, C), lambda n: (0, 0, 0)),      # dense 3x3 weights (per tap)
            pl.BlockSpec((9, C, 1), lambda n: (0, 0, 0)),      # depthwise weights (per tap)
            pl.BlockSpec((C, C), lambda n: (0, 0)),            # alpha * pointwise weight
            pl.BlockSpec((C, 1), lambda n: (0, 0)),            # alpha * pointwise bias
        ],
        out_specs=pl.BlockSpec((None, C, L), lambda n: (n, 0, 0)),
        compiler_params=pltpu.CompilerParams(dimension_semantics=("parallel",)),
    )(x_flat, masks, w1_t, wd_t, wp_s, bp_s)
    return out_flat.reshape(N, C, H, W)


def ref_forward(x, w1, wd, wp, bp, alpha):
    """Pure-JAX/XLA reference matching the PyTorch module."""
    C = x.shape[1]
    prec = lax.Precision.HIGHEST
    pooled = lax.reduce_window(
        x, 0.0, lax.add, (1, 1, 3, 3), (1, 1, 1, 1),
        [(0, 0), (0, 0), (1, 1), (1, 1)]) / 9.0
    hf = x - pooled
    dn = ("NCHW", "OIHW", "NCHW")
    y = lax.conv_general_dilated(hf, w1, (1, 1), [(1, 1), (1, 1)],
                                 dimension_numbers=dn, precision=prec)
    y = jnp.maximum(y, 0.0)
    y = lax.conv_general_dilated(y, wd.reshape(C, 1, 3, 3), (1, 1),
                                 [(1, 1), (1, 1)], dimension_numbers=dn,
                                 feature_group_count=C, precision=prec)
    y = lax.conv_general_dilated(y, wp.reshape(C, C, 1, 1), (1, 1),
                                 [(0, 0), (0, 0)], dimension_numbers=dn,
                                 precision=prec)
    y = y + bp.reshape(1, C, 1, 1)
    return alpha * y


if __name__ == "__main__":
    N, C, H, W = 2, 4, 16, 16

    key = jax.random.PRNGKey(0)
    kx, k1, kd, kp, kb = jax.random.split(key, 5)

    x = jax.random.normal(kx, (N, C, H, W), dtype=jnp.float32)
    # Deterministic synthetic parameters (shapes follow nn.Conv2d in __init__).
    w1 = 0.2 * jax.random.normal(k1, (C, C, 3, 3), dtype=jnp.float32)   # conv3x3, no bias
    wd = 0.2 * jax.random.normal(kd, (C, 3, 3), dtype=jnp.float32)      # depthwise 3x3
    wp = 0.2 * jax.random.normal(kp, (C, C), dtype=jnp.float32)         # pointwise 1x1
    bp = 0.1 * jax.random.normal(kb, (C,), dtype=jnp.float32)           # pointwise bias
    alpha = jnp.float32(0.5)                                            # nn.Parameter(0.5)

    out = jax.block_until_ready(high_freq_enhancer(x, w1, wd, wp, bp, alpha))
    ref = jax.block_until_ready(ref_forward(x, w1, wd, wp, bp, alpha))

    if not jnp.allclose(out, ref, atol=1e-3, rtol=1e-3):
        raise AssertionError(
            f"Pallas kernel mismatch vs reference; max abs err = "
            f"{float(jnp.max(jnp.abs(out - ref)))}")

    print("KERNEL_OK")
</pallas_src>

<mosaic_0001>
module attributes {stable_mosaic.version = 11 : i64} {
  func.func @probe(%arg0: memref<8x128xf32, #tpu.memory_space<vmem>>, %arg1: memref<8x128xf32, #tpu.memory_space<vmem>>) attributes {dimension_semantics = [], scalar_prefetch = 0 : i64, scratch_operands = 0 : i64, tpu.core_type = #tpu.core_type<tc>} {
    %c0 = arith.constant 0 : index
    %c0_0 = arith.constant 0 : index
    %0 = vector.load %arg0[%c0, %c0_0] : memref<8x128xf32, #tpu.memory_space<vmem>>, vector<8x128xf32>
    %c1_i32 = arith.constant 1 : i32
    %1 = tpu.dynamic_rotate %0 by %c1_i32 dim 1 : vector<8x128xf32>, i32 -> vector<8x128xf32>
    %c0_1 = arith.constant 0 : index
    %c0_2 = arith.constant 0 : index
    %2 = vector.load %arg1[%c0_1, %c0_2] : memref<8x128xf32, #tpu.memory_space<vmem>>, vector<8x128xf32>
    tpu.vector_store %arg1[%c0_1, %c0_2], %1 {strides = array<i32>} : memref<8x128xf32, #tpu.memory_space<vmem>>, vector<8x128xf32>,
    return
  }
}

</mosaic_0001>

<llo_original>
// kernel: tpu_custom_call.1
$region0: #{tpu_custom_call.1}
  #allocation0 [shape = 'u32[]', space=smem, size = 0x4, offset = 0x4, fixed_abs, tag = 'smem constant byte address 0x4 - core index']
  #allocation1 [shape = 'u32[72,128]{1,0:T(1,128)}', space=vmem, size = 0x9000, scoped, tag = 'internal scratch']
  %s0 = inlined_call_operand.hbm [shape: f32[8,128], index: 0, kind: input, shape index: {}]
  %s1 = inlined_call_operand.hbm [shape: f32[8,128], index: 1, kind: output, shape index: {}]
  %s2 = sld [smem:[#allocation0]]
  $region18: #{tpu_custom_call.1} parent=0
    _
  %s4 = ssub.s32 1, %s2
  %s5 = scalar_select 0, %s4, %s2
  $region1: #{tpu_custom_call.1} parent=0
    #allocation2 [shape = 'u8[4096]{0}', space=vmem, size = 0x1000, scoped, tag = 'input window, operand 0, single buffered']
    #allocation3 [shape = 's32[1]{0}', space=sflag, size = 0x4, scoped, tag = 'scoped memory for tpu_custom_call.1']
    #allocation4 [shape = 's32[1]{0}', space=sflag, size = 0x4, scoped, tag = 'scoped memory for tpu_custom_call.1']
    #allocation5 [shape = 'u8[4096]{0}', space=vmem, size = 0x1000, scoped, tag = 'output window, operand 0, single buffered']
    %6 = vsyncpa [#allocation3], 0
    %7 = vsyncpa [#allocation4], 0
    // Predicated region
    $region2: #{tpu_custom_call.1} parent=1 // pred_check
      _
    $region3: #{tpu_custom_call.1} parent=1 // pred_check_branch
      %9 = sbr.rel (0) target = $region5
    $region4: #{tpu_custom_call.1} parent=1 // pred_region
      %11 = vsyncadd [#allocation3], 0
      %s13 = sshll.u32 %s0, 4
      %s14 = int_to_ptr.hbm [resolvable:$true] %s13
      %s15 = sshll.u32 [#allocation2], 4
      %s16 = int_to_ptr.vmem [resolvable:$true] %s15
      %18 = dma.hbm_to_vmem [thread:$0]  %s14, 128, %s16, [#allocation3]
    $region5: #{tpu_custom_call.1} parent=1 // pred_fallthru
      _
    // Predicated region
    $region6: #{tpu_custom_call.1} parent=1 // pred_check
      _
    $region7: #{tpu_custom_call.1} parent=1 // pred_check_branch
      %20 = sbr.rel (0) target = $region9
    $region8: #{tpu_custom_call.1} parent=1 // pred_region
      %22 = dma.done [#allocation3], 128
    $region9: #{tpu_custom_call.1} parent=1 // pred_fallthru
      _
    %v23 = vld [vmem:[#allocation2] sm:$0xff]
    %24 = vrot.lane.b32.xlu0 %v23, 1
    %v25 = vpop.permute.xlu0 %24
    %26 = vst [vmem:[#allocation5] sm:$0xff] %v25
    // Predicated region
    $region10: #{tpu_custom_call.1} parent=1 // pred_check
      _
    $region11: #{tpu_custom_call.1} parent=1 // pred_check_branch
      %28 = sbr.rel (0) target = $region13
    $region12: #{tpu_custom_call.1} parent=1 // pred_region
      %30 = vsyncadd [#allocation4], 0
      %s32 = sshll.u32 [#allocation5], 4
      %s33 = int_to_ptr.vmem [resolvable:$true] %s32
      %s34 = sshll.u32 %s1, 4
      %s35 = int_to_ptr.hbm [resolvable:$true] %s34
      %37 = dma.vmem_to_hbm [thread:$0]  %s33, 128, %s35, [#allocation4]
    $region13: #{tpu_custom_call.1} parent=1 // pred_fallthru
      _
    // Predicated region
    $region14: #{tpu_custom_call.1} parent=1 // pred_check
      _
    $region15: #{tpu_custom_call.1} parent=1 // pred_check_branch
      %39 = sbr.rel (0) target = $region17
    $region16: #{tpu_custom_call.1} parent=1 // pred_region
      %41 = dma.done [#allocation4], 128
    $region17: #{tpu_custom_call.1} parent=1 // pred_fallthru
      _
    %42 = vsyncpa [#allocation3], 1
    %43 = vsyncpa [#allocation4], 1

</llo_original>
